<compile_context>
chip_gen: v5e
topology: v5e:2x2
jax: 0.10.0
libtpu: 0.0.40
codegen_flags: <defaults>
</compile_context>

<pallas_src>
import jax
import jax.numpy as jnp
from jax.experimental import pallas as pl
from jax.experimental.pallas import tpu as pltpu


def _round_up(n, m):
    return ((n + m - 1) // m) * m


# ----------------------------------------------------------------------------
# Kernel: 3 dependent MXU dots at full 128-lane width, one sigmoid, one store.
# slab_ref layout: plane 0 = W_fe, plane 1 = [W_t1 | W_p1] (concat on lanes),
#                  plane 2 = block-diag [W_t2 ; W_p2] -> lanes 0/1,
#                  plane 3 = biases (row 0 = b_fe, row 1 = [b_t1|b_p1],
#                                    row 2 = [b_t2, b_p2]).
# All planes are zero-padded to (D, D) with D a multiple of 128, so no slicing
# of the weight tiles is needed; padded hidden lanes stay exactly 0 through
# the bias add + ReLU, and padded output lanes (sigmoid(0)=0.5) are discarded
# in the wrapper.
# ----------------------------------------------------------------------------
def _fair_fcnn_kernel(x_ref, slab_ref, out_ref):
    x = x_ref[...]                                  # (TB, D) f32, lane-padded

    w0 = slab_ref[0]                                # (D, D) feature extractor
    w1 = slab_ref[1]                                # (D, D) fused head layer 1
    w2 = slab_ref[2]                                # (D, D) fused head layer 2
    b0 = slab_ref[3, 0:1, :]                        # (1, D)
    b1 = slab_ref[3, 1:2, :]                        # (1, D)
    b2 = slab_ref[3, 2:3, :]                        # (1, D)

    # feature_extractor: Linear + ReLU
    feats = jnp.dot(x, w0, preferred_element_type=jnp.float32) + b0
    feats = jnp.maximum(feats, 0.0)

    # fused head layer 1 (task hidden ++ protected hidden): Linear + ReLU
    # (gradient reversal is identity in forward, so both heads consume feats)
    h = jnp.dot(feats, w1, preferred_element_type=jnp.float32) + b1
    h = jnp.maximum(h, 0.0)

    # fused head layer 2 (block diagonal): Linear + Sigmoid
    #   lane 0 <- task logit, lane 1 <- protected logit, lanes >=2 padding
    logits = jnp.dot(h, w2, preferred_element_type=jnp.float32) + b2
    out_ref[...] = jax.nn.sigmoid(logits).astype(out_ref.dtype)


# ----------------------------------------------------------------------------
# One-time (init-time) packing of the 10 PyTorch-style parameter tensors into
# a single lane-aligned slab.  NOT in the per-call path.
# ----------------------------------------------------------------------------
def pack_params(params):
    in_size, f_size = params["w_fe"].shape
    h_task = params["w_t1"].shape[1]
    h_prot = params["w_p1"].shape[1]
    h_fused = h_task + h_prot

    D = _round_up(max(in_size, f_size, h_fused, 8), 128)   # full lane width

    slab = jnp.zeros((4, D, D), jnp.float32)
    # plane 0: feature extractor weight
    slab = slab.at[0, :in_size, :f_size].set(params["w_fe"])
    # plane 1: concatenated head-1 weights
    slab = slab.at[1, :f_size, :h_task].set(params["w_t1"])
    slab = slab.at[1, :f_size, h_task:h_fused].set(params["w_p1"])
    # plane 2: block-diagonal head-2 weights (lane 0 = task, lane 1 = protected)
    slab = slab.at[2, :h_task, 0:1].set(params["w_t2"])
    slab = slab.at[2, h_task:h_fused, 1:2].set(params["w_p2"])
    # plane 3: biases, one row per layer (padded lanes stay exactly zero)
    slab = slab.at[3, 0, :f_size].set(params["b_fe"].reshape(-1))
    slab = slab.at[3, 1, :h_task].set(params["b_t1"].reshape(-1))
    slab = slab.at[3, 1, h_task:h_fused].set(params["b_p1"].reshape(-1))
    slab = slab.at[3, 2, 0:1].set(params["b_t2"].reshape(-1))
    slab = slab.at[3, 2, 1:2].set(params["b_p2"].reshape(-1))
    return slab


# ----------------------------------------------------------------------------
# Forward wrapper.  `slab` is the pre-packed parameter slab from pack_params.
# Returns (task_output, protected_attr_output), each (B, 1).
# ----------------------------------------------------------------------------
def fair_representation_fcnn(x, slab, *, tb_max=512):
    B, in_size = x.shape
    D = slab.shape[1]

    x32 = x.astype(jnp.float32)
    if in_size < D:                                   # lane-pad input to D
        x32 = jnp.pad(x32, ((0, 0), (0, D - in_size)))

    # Batch tiling: TB rows per grid step (weights stay VMEM-resident).
    TB = min(tb_max, _round_up(B, 8))
    B_pad = _round_up(B, TB)
    if B_pad != B:
        x32 = jnp.pad(x32, ((0, B_pad - B), (0, 0)))

    out = pl.pallas_call(
        _fair_fcnn_kernel,
        out_shape=jax.ShapeDtypeStruct((B_pad, D), jnp.float32),
        grid=(B_pad // TB,),
        in_specs=[
            pl.BlockSpec((TB, D), lambda i: (i, 0)),       # x: tiled on batch
            pl.BlockSpec((4, D, D), lambda i: (0, 0, 0)),  # slab: resident
        ],
        out_specs=pl.BlockSpec((TB, D), lambda i: (i, 0)), # lane-dense output
        compiler_params=pltpu.CompilerParams(
            dimension_semantics=("parallel",),             # v7x: both TCs
            vmem_limit_bytes=32 * 1024 * 1024,
        ),
    )(x32, slab)

    task_out = out[:B, 0:1]
    prot_out = out[:B, 1:2]
    return task_out, prot_out


# ----------------------------------------------------------------------------
# Init + pure-JAX reference (mirrors the PyTorch module exactly, no fusion).
# ----------------------------------------------------------------------------
def init_params(key, input_size, hidden_size, feature_size=12):
    """PyTorch-Linear-style init (uniform +-1/sqrt(fan_in)).
    Weights stored transposed as (in, out); biases as (1, out)."""
    def linear(key, fan_in, fan_out):
        kw, kb = jax.random.split(key)
        bound = 1.0 / jnp.sqrt(fan_in)
        w = jax.random.uniform(kw, (fan_in, fan_out), jnp.float32, -bound, bound)
        b = jax.random.uniform(kb, (1, fan_out), jnp.float32, -bound, bound)
        return w, b

    keys = jax.random.split(key, 5)
    w_fe, b_fe = linear(keys[0], input_size, feature_size)
    w_t1, b_t1 = linear(keys[1], feature_size, hidden_size)
    w_t2, b_t2 = linear(keys[2], hidden_size, 1)
    w_p1, b_p1 = linear(keys[3], feature_size, hidden_size // 2)
    w_p2, b_p2 = linear(keys[4], hidden_size // 2, 1)
    return dict(w_fe=w_fe, b_fe=b_fe, w_t1=w_t1, b_t1=b_t1, w_t2=w_t2,
                b_t2=b_t2, w_p1=w_p1, b_p1=b_p1, w_p2=w_p2, b_p2=b_p2)


def reference_forward(x, p):
    feats = jnp.maximum(x @ p["w_fe"] + p["b_fe"], 0.0)
    t = jnp.maximum(feats @ p["w_t1"] + p["b_t1"], 0.0)
    t = jax.nn.sigmoid(t @ p["w_t2"] + p["b_t2"])
    # gradient reversal is identity in forward
    pr = jnp.maximum(feats @ p["w_p1"] + p["b_p1"], 0.0)
    pr = jax.nn.sigmoid(pr @ p["w_p2"] + p["b_p2"])
    return t, pr


if __name__ == "__main__":
    # Full-precision f32 matmuls everywhere so kernel and reference agree to 1e-5.
    jax.config.update("jax_default_matmul_precision", "highest")

    key = jax.random.PRNGKey(0)
    k_x, k_p = jax.random.split(key)

    batch = 8
    input_size = 32
    hidden_size = 32
    feature_size = 12

    x = jax.random.normal(k_x, (batch, input_size), jnp.float32)
    params = init_params(k_p, input_size, hidden_size, feature_size)

    # Pack parameters ONCE (init time) — not in the per-call path.
    slab = jax.block_until_ready(pack_params(params))

    task_out, prot_out = fair_representation_fcnn(x, slab)
    task_out = jax.block_until_ready(task_out)
    prot_out = jax.block_until_ready(prot_out)

    # Correctness check against the pure-JAX reference.
    ref_task, ref_prot = reference_forward(x, params)
    assert task_out.shape == (batch, 1) and prot_out.shape == (batch, 1)
    assert jnp.allclose(task_out, ref_task, atol=1e-5, rtol=1e-5)
    assert jnp.allclose(prot_out, ref_prot, atol=1e-5, rtol=1e-5)

    print("KERNEL_OK")
</pallas_src>

<mosaic_0001>
module attributes {stable_mosaic.version = 11 : i64} {
  func.func @_fair_fcnn_kernel(%arg0: i32, %arg1: memref<8x128xf32, #tpu.memory_space<vmem>>, %arg2: memref<4x128x128xf32, #tpu.memory_space<vmem>>, %arg3: memref<8x128xf32, #tpu.memory_space<vmem>>) attributes {dimension_semantics = [#tpu.dimension_semantics<parallel>], iteration_bounds = array<i64: 1>, scalar_prefetch = 0 : i64, scratch_operands = 0 : i64, tpu.core_type = #tpu.core_type<tc>, window_params = [{transform_indices = @transform_0, window_bounds = array<i64: 8, 128>}, {pipeline_mode = #tpu.pipeline_mode<synchronous>, transform_indices = @transform_1, window_bounds = array<i64: 4, 128, 128>}, {transform_indices = @transform_2, window_bounds = array<i64: 8, 128>}]} {
    %c0 = arith.constant 0 : index
    %c0_0 = arith.constant 0 : index
    %0 = vector.load %arg1[%c0, %c0_0] : memref<8x128xf32, #tpu.memory_space<vmem>>, vector<8x128xf32>
    %c0_1 = arith.constant 0 : index
    %c0_2 = arith.constant 0 : index
    %c0_3 = arith.constant 0 : index
    %1 = vector.load %arg2[%c0_1, %c0_2, %c0_3] : memref<4x128x128xf32, #tpu.memory_space<vmem>>, vector<1x128x128xf32>
    %2 = vector.shape_cast %1 : vector<1x128x128xf32> to vector<128x128xf32>
    %c1 = arith.constant 1 : index
    %c0_4 = arith.constant 0 : index
    %c0_5 = arith.constant 0 : index
    %3 = vector.load %arg2[%c1, %c0_4, %c0_5] : memref<4x128x128xf32, #tpu.memory_space<vmem>>, vector<1x128x128xf32>
    %4 = vector.shape_cast %3 : vector<1x128x128xf32> to vector<128x128xf32>
    %c2 = arith.constant 2 : index
    %c0_6 = arith.constant 0 : index
    %c0_7 = arith.constant 0 : index
    %5 = vector.load %arg2[%c2, %c0_6, %c0_7] : memref<4x128x128xf32, #tpu.memory_space<vmem>>, vector<1x128x128xf32>
    %6 = vector.shape_cast %5 : vector<1x128x128xf32> to vector<128x128xf32>
    %c3 = arith.constant 3 : index
    %c0_8 = arith.constant 0 : index
    %c0_9 = arith.constant 0 : index
    %7 = vector.load %arg2[%c3, %c0_8, %c0_9] : memref<4x128x128xf32, #tpu.memory_space<vmem>>, vector<1x1x128xf32>
    %8 = vector.shape_cast %7 : vector<1x1x128xf32> to vector<1x128xf32>
    %c3_10 = arith.constant 3 : index
    %c1_11 = arith.constant 1 : index
    %c0_12 = arith.constant 0 : index
    %9 = vector.load %arg2[%c3_10, %c1_11, %c0_12] : memref<4x128x128xf32, #tpu.memory_space<vmem>>, vector<1x1x128xf32>
    %10 = vector.shape_cast %9 : vector<1x1x128xf32> to vector<1x128xf32>
    %c3_13 = arith.constant 3 : index
    %c2_14 = arith.constant 2 : index
    %c0_15 = arith.constant 0 : index
    %11 = vector.load %arg2[%c3_13, %c2_14, %c0_15] : memref<4x128x128xf32, #tpu.memory_space<vmem>>, vector<1x1x128xf32>
    %12 = vector.shape_cast %11 : vector<1x1x128xf32> to vector<1x128xf32>
    %cst = arith.constant dense<0.000000e+00> : vector<8x128xf32>
    %13 = tpu.matmul %0, %2, %cst {dimension_numbers = #tpu.dot_dimension_numbers<[1], [0], [0], [1], [0, 0, 1, 1], [], []>, precision = #tpu.contract_precision<fp32>} : vector<8x128xf32>, vector<128x128xf32>, vector<8x128xf32> -> vector<8x128xf32>
    %14 = vector.broadcast %8 : vector<1x128xf32> to vector<8x128xf32>
    %15 = arith.addf %13, %14 : vector<8x128xf32>
    %cst_16 = arith.constant 0.000000e+00 : f32
    %16 = vector.broadcast %cst_16 : f32 to vector<8x128xf32>
    %17 = arith.maximumf %15, %16 : vector<8x128xf32>
    %cst_17 = arith.constant dense<0.000000e+00> : vector<8x128xf32>
    %18 = tpu.matmul %17, %4, %cst_17 {dimension_numbers = #tpu.dot_dimension_numbers<[1], [0], [0], [1], [0, 0, 1, 1], [], []>, precision = #tpu.contract_precision<fp32>} : vector<8x128xf32>, vector<128x128xf32>, vector<8x128xf32> -> vector<8x128xf32>
    %19 = vector.broadcast %10 : vector<1x128xf32> to vector<8x128xf32>
    %20 = arith.addf %18, %19 : vector<8x128xf32>
    %cst_18 = arith.constant 0.000000e+00 : f32
    %21 = vector.broadcast %cst_18 : f32 to vector<8x128xf32>
    %22 = arith.maximumf %20, %21 : vector<8x128xf32>
    %cst_19 = arith.constant dense<0.000000e+00> : vector<8x128xf32>
    %23 = tpu.matmul %22, %6, %cst_19 {dimension_numbers = #tpu.dot_dimension_numbers<[1], [0], [0], [1], [0, 0, 1, 1], [], []>, precision = #tpu.contract_precision<fp32>} : vector<8x128xf32>, vector<128x128xf32>, vector<8x128xf32> -> vector<8x128xf32>
    %24 = vector.broadcast %12 : vector<1x128xf32> to vector<8x128xf32>
    %25 = arith.addf %23, %24 : vector<8x128xf32>
    %26 = arith.negf %25 : vector<8x128xf32>
    %27 = math.exp %26 : vector<8x128xf32>
    %cst_20 = arith.constant 1.000000e+00 : f32
    %28 = vector.broadcast %cst_20 : f32 to vector<8x128xf32>
    %29 = arith.addf %28, %27 : vector<8x128xf32>
    %30 = arith.divf %28, %29 : vector<8x128xf32>
    %c0_21 = arith.constant 0 : index
    %c0_22 = arith.constant 0 : index
    %31 = vector.load %arg3[%c0_21, %c0_22] : memref<8x128xf32, #tpu.memory_space<vmem>>, vector<8x128xf32>
    tpu.vector_store %arg3[%c0_21, %c0_22], %30 {strides = array<i32>} : memref<8x128xf32, #tpu.memory_space<vmem>>, vector<8x128xf32>,
    return
  }
  func.func @transform_0(%arg0: i32) -> (i32, i32) {
    %c0_i32 = arith.constant 0 : i32
    %c0_i32_0 = arith.constant 0 : i32
    return %arg0, %c0_i32 : i32, i32
  }
  func.func @transform_1(%arg0: i32) -> (i32, i32, i32) {
    %c0_i32 = arith.constant 0 : i32
    %c0_i32_0 = arith.constant 0 : i32
    %c0_i32_1 = arith.constant 0 : i32
    %c0_i32_2 = arith.constant 0 : i32
    return %c0_i32, %c0_i32_0, %c0_i32_1 : i32, i32, i32
  }
  func.func @transform_2(%arg0: i32) -> (i32, i32) {
    %c0_i32 = arith.constant 0 : i32
    %c0_i32_0 = arith.constant 0 : i32
    return %arg0, %c0_i32 : i32, i32
  }
}

</mosaic_0001>

<llo_original>
// kernel: tpu_custom_call.1
$region0: #{tpu_custom_call.1}
  #allocation0 [shape = 'u32[]', space=smem, size = 0x4, offset = 0x4, fixed_abs, tag = 'smem constant byte address 0x4 - core index']
  #allocation1 [shape = 'u32[72,128]{1,0:T(1,128)}', space=vmem, size = 0x9000, scoped, tag = 'internal scratch']
  %s0 = inlined_call_operand.hbm [shape: f32[8,128], index: 0, kind: input, shape index: {}]
  %s1 = inlined_call_operand.hbm [shape: f32[4,128,128], index: 1, kind: input, shape index: {}]
  %s2 = inlined_call_operand.hbm [shape: f32[8,128], index: 2, kind: output, shape index: {}]
  %s3 = sld [smem:[#allocation0]]
  $region26: #{tpu_custom_call.1} parent=0
    _
  %s5 = ssub.s32 1, %s3
  %s6 = scalar_select 0, %s5, %s3
  $region1: #{tpu_custom_call.1} parent=0
    #allocation2 [shape = 'u8[4096]{0}', space=vmem, size = 0x1000, scoped, tag = 'input window, operand 0, single buffered']
    #allocation3 [shape = 's32[1]{0}', space=sflag, size = 0x4, scoped, tag = 'scoped memory for tpu_custom_call.1']
    #allocation4 [shape = 's32[1]{0}', space=sflag, size = 0x4, scoped, tag = 'scoped memory for tpu_custom_call.1']
    #allocation5 [shape = 'u8[262144]{0}', space=vmem, size = 0x40000, scoped, tag = 'input window, operand 1, single buffered']
    #allocation6 [shape = 's32[1]{0}', space=sflag, size = 0x4, scoped, tag = 'scoped memory for tpu_custom_call.1']
    #allocation7 [shape = 'u8[4096]{0}', space=vmem, size = 0x1000, scoped, tag = 'output window, operand 0, single buffered']
    %7 = vsyncpa [#allocation3], 0
    %8 = vsyncpa [#allocation6], 0
    %9 = vsyncpa [#allocation4], 0
    // Predicated region
    $region2: #{tpu_custom_call.1} parent=1 // pred_check
      _
    $region3: #{tpu_custom_call.1} parent=1 // pred_check_branch
      %11 = sbr.rel (0) target = $region5
    $region4: #{tpu_custom_call.1} parent=1 // pred_region
      %13 = vsyncadd [#allocation3], 0
      %s15 = sshll.u32 %s0, 4
      %s16 = int_to_ptr.hbm [resolvable:$true] %s15
      %s17 = sshll.u32 [#allocation2], 4
      %s18 = int_to_ptr.vmem [resolvable:$true] %s17
      %20 = dma.hbm_to_vmem [thread:$0]  %s16, 128, %s18, [#allocation3]
    $region5: #{tpu_custom_call.1} parent=1 // pred_fallthru
      _
    // Predicated region
    $region6: #{tpu_custom_call.1} parent=1 // pred_check
      _
    $region7: #{tpu_custom_call.1} parent=1 // pred_check_branch
      %22 = sbr.rel (0) target = $region9
    $region8: #{tpu_custom_call.1} parent=1 // pred_region
      %24 = vsyncadd [#allocation6], 0
      %s25 = sshll.u32 %s1, 4
      %s26 = int_to_ptr.hbm [resolvable:$true] %s25
      %s27 = sshll.u32 [#allocation5], 4
      %s28 = int_to_ptr.vmem [resolvable:$true] %s27
      %33 = dma.hbm_to_vmem [thread:$0]  %s26, 8192, %s28, [#allocation6], 128, 128, 8
    $region9: #{tpu_custom_call.1} parent=1 // pred_fallthru
      _
    // Predicated region
    $region10: #{tpu_custom_call.1} parent=1 // pred_check
      _
    $region11: #{tpu_custom_call.1} parent=1 // pred_check_branch
      %35 = sbr.rel (0) target = $region13
    $region12: #{tpu_custom_call.1} parent=1 // pred_region
      %37 = dma.done [#allocation3], 128
    $region13: #{tpu_custom_call.1} parent=1 // pred_fallthru
      _
    // Predicated region
    $region14: #{tpu_custom_call.1} parent=1 // pred_check
      _
    $region15: #{tpu_custom_call.1} parent=1 // pred_check_branch
      %39 = sbr.rel (0) target = $region17
    $region16: #{tpu_custom_call.1} parent=1 // pred_region
      %41 = dma.done [#allocation6], 8192
    $region17: #{tpu_custom_call.1} parent=1 // pred_fallthru
      _
    %v42 = vld [vmem:[#allocation2] sm:$0xff]
    %v43 = vld [vmem:[#allocation5] sm:$0xff]
    %v44 = vld [vmem:[#allocation5 + $0x8] sm:$0xff]
    %v45 = vld [vmem:[#allocation5 + $0x10] sm:$0xff]
    %v46 = vld [vmem:[#allocation5 + $0x18] sm:$0xff]
    %v47 = vld [vmem:[#allocation5 + $0x20] sm:$0xff]
    %v48 = vld [vmem:[#allocation5 + $0x28] sm:$0xff]
    %v49 = vld [vmem:[#allocation5 + $0x30] sm:$0xff]
    %v50 = vld [vmem:[#allocation5 + $0x38] sm:$0xff]
    %v51 = vld [vmem:[#allocation5 + $0x40] sm:$0xff]
    %v52 = vld [vmem:[#allocation5 + $0x48] sm:$0xff]
    %v53 = vld [vmem:[#allocation5 + $0x50] sm:$0xff]
    %v54 = vld [vmem:[#allocation5 + $0x58] sm:$0xff]
    %v55 = vld [vmem:[#allocation5 + $0x60] sm:$0xff]
    %v56 = vld [vmem:[#allocation5 + $0x68] sm:$0xff]
    %v57 = vld [vmem:[#allocation5 + $0x70] sm:$0xff]
    %v58 = vld [vmem:[#allocation5 + $0x78] sm:$0xff]
    %s59 = scalar_lea.vmem [#allocation5], 128
    %v60 = vld [vmem:[%s59] sm:$0xff]
    %v61 = vld [vmem:[%s59 + $0x8] sm:$0xff]
    %v62 = vld [vmem:[%s59 + $0x10] sm:$0xff]
    %v63 = vld [vmem:[%s59 + $0x18] sm:$0xff]
    %v64 = vld [vmem:[%s59 + $0x20] sm:$0xff]
    %v65 = vld [vmem:[%s59 + $0x28] sm:$0xff]
    %v66 = vld [vmem:[%s59 + $0x30] sm:$0xff]
    %v67 = vld [vmem:[%s59 + $0x38] sm:$0xff]
    %v68 = vld [vmem:[%s59 + $0x40] sm:$0xff]
    %v69 = vld [vmem:[%s59 + $0x48] sm:$0xff]
    %v70 = vld [vmem:[%s59 + $0x50] sm:$0xff]
    %v71 = vld [vmem:[%s59 + $0x58] sm:$0xff]
    %v72 = vld [vmem:[%s59 + $0x60] sm:$0xff]
    %v73 = vld [vmem:[%s59 + $0x68] sm:$0xff]
    %v74 = vld [vmem:[%s59 + $0x70] sm:$0xff]
    %v75 = vld [vmem:[%s59 + $0x78] sm:$0xff]
    %s76 = scalar_lea.vmem [#allocation5], 256
    %v77 = vld [vmem:[%s76] sm:$0xff]
    %v78 = vld [vmem:[%s76 + $0x8] sm:$0xff]
    %v79 = vld [vmem:[%s76 + $0x10] sm:$0xff]
    %v80 = vld [vmem:[%s76 + $0x18] sm:$0xff]
    %v81 = vld [vmem:[%s76 + $0x20] sm:$0xff]
    %v82 = vld [vmem:[%s76 + $0x28] sm:$0xff]
    %v83 = vld [vmem:[%s76 + $0x30] sm:$0xff]
    %v84 = vld [vmem:[%s76 + $0x38] sm:$0xff]
    %v85 = vld [vmem:[%s76 + $0x40] sm:$0xff]
    %v86 = vld [vmem:[%s76 + $0x48] sm:$0xff]
    %v87 = vld [vmem:[%s76 + $0x50] sm:$0xff]
    %v88 = vld [vmem:[%s76 + $0x58] sm:$0xff]
    %v89 = vld [vmem:[%s76 + $0x60] sm:$0xff]
    %v90 = vld [vmem:[%s76 + $0x68] sm:$0xff]
    %v91 = vld [vmem:[%s76 + $0x70] sm:$0xff]
    %v92 = vld [vmem:[%s76 + $0x78] sm:$0xff]
    %s93 = scalar_lea.vmem [#allocation5], 384
    %v94 = vld [vmem:[%s93] sm:$0x1]
    %v95 = vld [vmem:[%s93 + $0x1] sm:$0x1]
    %v96 = vld [vmem:[%s93 + $0x2] sm:$0x1]
    %v97 = vperm.slane %v94, 0
    %v98 = vand.u32 %v58, 4294901760
    %99 = vmatpush.msra.mxu0 %v98
    %v100 = vand.u32 %v57, 4294901760
    %101 = vmatpush.msra.mxu0 %v100
    %v102 = vand.u32 %v56, 4294901760
    %103 = vmatpush.msra.mxu0 %v102
    %v104 = vand.u32 %v55, 4294901760
    %105 = vmatpush.msra.mxu0 %v104
    %v106 = vand.u32 %v54, 4294901760
    %107 = vmatpush.msra.mxu0 %v106
    %v108 = vand.u32 %v53, 4294901760
    %109 = vmatpush.msra.mxu0 %v108
    %v110 = vand.u32 %v52, 4294901760
    %111 = vmatpush.msra.mxu0 %v110
    %v112 = vand.u32 %v51, 4294901760
    %113 = vmatpush.msra.mxu0 %v112
    %v114 = vand.u32 %v50, 4294901760
    %115 = vmatpush.msra.mxu0 %v114
    %v116 = vand.u32 %v49, 4294901760
    %117 = vmatpush.msra.mxu0 %v116
    %v118 = vand.u32 %v48, 4294901760
    %119 = vmatpush.msra.mxu0 %v118
    %v120 = vand.u32 %v47, 4294901760
    %121 = vmatpush.msra.mxu0 %v120
    %v122 = vand.u32 %v46, 4294901760
    %123 = vmatpush.msra.mxu0 %v122
    %v124 = vand.u32 %v45, 4294901760
    %125 = vmatpush.msra.mxu0 %v124
    %v126 = vand.u32 %v44, 4294901760
    %127 = vmatpush.msra.mxu0 %v126
    %v128 = vand.u32 %v43, 4294901760
    %129 = vmatpush.msra.mxu0 %v128
    %v130 = vand.u32 %v42, 4294901760
    %v131 = vsub.f32 %v42, %v130
    %v132 = vand.u32 %v131, 4294901760
    %v133 = vsub.f32 %v131, %v132
    %v134 = vand.u32 %v133, 4294901760
    %135 = vmatmul.f32.gmra.mxu0 %v134
    %v136 = vpop.f32.mrf.mxu0
    %v137 = vadd.f32 %v97, %v136
    %138 = vdwg.mxu0
    %v139 = vand.u32 %v58, 4294901760
    %v140 = vsub.f32 %v58, %v139
    %v141 = vand.u32 %v140, 4294901760
    %v142 = vsub.f32 %v140, %v141
    %v143 = vand.u32 %v142, 4294901760
    %144 = vmatpush.msra.mxu0 %v143
    %v145 = vand.u32 %v57, 4294901760
    %v146 = vsub.f32 %v57, %v145
    %v147 = vand.u32 %v146, 4294901760
    %v148 = vsub.f32 %v146, %v147
    %v149 = vand.u32 %v148, 4294901760
    %150 = vmatpush.msra.mxu0 %v149
    %v151 = vand.u32 %v56, 4294901760
    %v152 = vsub.f32 %v56, %v151
    %v153 = vand.u32 %v152, 4294901760
    %v154 = vsub.f32 %v152, %v153
    %v155 = vand.u32 %v154, 4294901760
    %156 = vmatpush.msra.mxu0 %v155
    %v157 = vand.u32 %v55, 4294901760
    %v158 = vsub.f32 %v55, %v157
    %v159 = vand.u32 %v158, 4294901760
    %v160 = vsub.f32 %v158, %v159
    %v161 = vand.u32 %v160, 4294901760
    %162 = vmatpush.msra.mxu0 %v161
    %v163 = vand.u32 %v54, 4294901760
    %v164 = vsub.f32 %v54, %v163
    %v165 = vand.u32 %v164, 4294901760
    %v166 = vsub.f32 %v164, %v165
    %v167 = vand.u32 %v166, 4294901760
    %168 = vmatpush.msra.mxu0 %v167
    %v169 = vand.u32 %v53, 4294901760
    %v170 = vsub.f32 %v53, %v169
    %v171 = vand.u32 %v170, 4294901760
    %v172 = vsub.f32 %v170, %v171
    %v173 = vand.u32 %v172, 4294901760
    %174 = vmatpush.msra.mxu0 %v173
    %v175 = vand.u32 %v52, 4294901760
    %v176 = vsub.f32 %v52, %v175
    %v177 = vand.u32 %v176, 4294901760
    %v178 = vsub.f32 %v176, %v177
    %v179 = vand.u32 %v178, 4294901760
    %180 = vmatpush.msra.mxu0 %v179
    %v181 = vand.u32 %v51, 4294901760
    %v182 = vsub.f32 %v51, %v181
    %v183 = vand.u32 %v182, 4294901760
    %v184 = vsub.f32 %v182, %v183
    %v185 = vand.u32 %v184, 4294901760
    %186 = vmatpush.msra.mxu0 %v185
    %v187 = vand.u32 %v50, 4294901760
    %v188 = vsub.f32 %v50, %v187
    %v189 = vand.u32 %v188, 4294901760
    %v190 = vsub.f32 %v188, %v189
    %v191 = vand.u32 %v190, 4294901760
    %192 = vmatpush.msra.mxu0 %v191
    %v193 = vand.u32 %v49, 4294901760
    %v194 = vsub.f32 %v49, %v193
    %v195 = vand.u32 %v194, 4294901760
    %v196 = vsub.f32 %v194, %v195
    %v197 = vand.u32 %v196, 4294901760
    %198 = vmatpush.msra.mxu0 %v197
    %v199 = vand.u32 %v48, 4294901760
    %v200 = vsub.f32 %v48, %v199
    %v201 = vand.u32 %v200, 4294901760
    %v202 = vsub.f32 %v200, %v201
    %v203 = vand.u32 %v202, 4294901760
    %204 = vmatpush.msra.mxu0 %v203
    %v205 = vand.u32 %v47, 4294901760
    %v206 = vsub.f32 %v47, %v205
    %v207 = vand.u32 %v206, 4294901760
    %v208 = vsub.f32 %v206, %v207
    %v209 = vand.u32 %v208, 4294901760
    %210 = vmatpush.msra.mxu0 %v209
    %v211 = vand.u32 %v46, 4294901760
    %v212 = vsub.f32 %v46, %v211
    %v213 = vand.u32 %v212, 4294901760
    %v214 = vsub.f32 %v212, %v213
    %v215 = vand.u32 %v214, 4294901760
    %216 = vmatpush.msra.mxu0 %v215
    %v217 = vand.u32 %v45, 4294901760
    %v218 = vsub.f32 %v45, %v217
    %v219 = vand.u32 %v218, 4294901760
    %v220 = vsub.f32 %v218, %v219
    %v221 = vand.u32 %v220, 4294901760
    %222 = vmatpush.msra.mxu0 %v221
    %v223 = vand.u32 %v44, 4294901760
    %v224 = vsub.f32 %v44, %v223
    %v225 = vand.u32 %v224, 4294901760
    %v226 = vsub.f32 %v224, %v225
    %v227 = vand.u32 %v226, 4294901760
    %228 = vmatpush.msra.mxu0 %v227
    %v229 = vand.u32 %v43, 4294901760
    %v230 = vsub.f32 %v43, %v229
    %v231 = vand.u32 %v230, 4294901760
    %v232 = vsub.f32 %v230, %v231
    %v233 = vand.u32 %v232, 4294901760
    %234 = vmatpush.msra.mxu0 %v233
    %v235 = vand.u32 %v42, 4294901760
    %236 = vmatmul.f32.gmra.mxu0 %v235
    %v237 = vpop.f32.mrf.mxu0
    %v238 = vadd.f32 %v137, %v237
    %239 = vdwg.mxu0
    %v240 = vand.u32 %v58, 4294901760
    %v241 = vsub.f32 %v58, %v240
    %242 = vmatpush.msra.mxu0 %v241
    %v243 = vand.u32 %v57, 4294901760
    %v244 = vsub.f32 %v57, %v243
    %245 = vmatpush.msra.mxu0 %v244
    %v246 = vand.u32 %v56, 4294901760
    %v247 = vsub.f32 %v56, %v246
    %248 = vmatpush.msra.mxu0 %v247
    %v249 = vand.u32 %v55, 4294901760
    %v250 = vsub.f32 %v55, %v249
    %251 = vmatpush.msra.mxu0 %v250
    %v252 = vand.u32 %v54, 4294901760
    %v253 = vsub.f32 %v54, %v252
    %254 = vmatpush.msra.mxu0 %v253
    %v255 = vand.u32 %v53, 4294901760
    %v256 = vsub.f32 %v53, %v255
    %257 = vmatpush.msra.mxu0 %v256
    %v258 = vand.u32 %v52, 4294901760
    %v259 = vsub.f32 %v52, %v258
    %260 = vmatpush.msra.mxu0 %v259
    %v261 = vand.u32 %v51, 4294901760
    %v262 = vsub.f32 %v51, %v261
    %263 = vmatpush.msra.mxu0 %v262
    %v264 = vand.u32 %v50, 4294901760
    %v265 = vsub.f32 %v50, %v264
    %266 = vmatpush.msra.mxu0 %v265
    %v267 = vand.u32 %v49, 4294901760
    %v268 = vsub.f32 %v49, %v267
    %269 = vmatpush.msra.mxu0 %v268
    %v270 = vand.u32 %v48, 4294901760
    %v271 = vsub.f32 %v48, %v270
    %272 = vmatpush.msra.mxu0 %v271
    %v273 = vand.u32 %v47, 4294901760
    %v274 = vsub.f32 %v47, %v273
    %275 = vmatpush.msra.mxu0 %v274
    %v276 = vand.u32 %v46, 4294901760
    %v277 = vsub.f32 %v46, %v276
    %278 = vmatpush.msra.mxu0 %v277
    %v279 = vand.u32 %v45, 4294901760
    %v280 = vsub.f32 %v45, %v279
    %281 = vmatpush.msra.mxu0 %v280
    %v282 = vand.u32 %v44, 4294901760
    %v283 = vsub.f32 %v44, %v282
    %284 = vmatpush.msra.mxu0 %v283
    %v285 = vand.u32 %v43, 4294901760
    %v286 = vsub.f32 %v43, %v285
    %287 = vmatpush.msra.mxu0 %v286
    %v288 = vand.u32 %v42, 4294901760
    %v289 = vsub.f32 %v42, %v288
    %290 = vmatmul.f32.gmra.mxu0 %v289
    %v291 = vpop.f32.mrf.mxu0
    %v292 = vadd.f32 %v238, %v291
    %293 = vdwg.mxu0
    %v294 = vand.u32 %v58, 4294901760
    %295 = vmatpush.msra.mxu0 %v294
    %v296 = vand.u32 %v57, 4294901760
    %297 = vmatpush.msra.mxu0 %v296
    %v298 = vand.u32 %v56, 4294901760
    %299 = vmatpush.msra.mxu0 %v298
    %v300 = vand.u32 %v55, 4294901760
    %301 = vmatpush.msra.mxu0 %v300
    %v302 = vand.u32 %v54, 4294901760
    %303 = vmatpush.msra.mxu0 %v302
    %v304 = vand.u32 %v53, 4294901760
    %305 = vmatpush.msra.mxu0 %v304
    %v306 = vand.u32 %v52, 4294901760
    %307 = vmatpush.msra.mxu0 %v306
    %v308 = vand.u32 %v51, 4294901760
    %309 = vmatpush.msra.mxu0 %v308
    %v310 = vand.u32 %v50, 4294901760
    %311 = vmatpush.msra.mxu0 %v310
    %v312 = vand.u32 %v49, 4294901760
    %313 = vmatpush.msra.mxu0 %v312
    %v314 = vand.u32 %v48, 4294901760
    %315 = vmatpush.msra.mxu0 %v314
    %v316 = vand.u32 %v47, 4294901760
    %317 = vmatpush.msra.mxu0 %v316
    %v318 = vand.u32 %v46, 4294901760
    %319 = vmatpush.msra.mxu0 %v318
    %v320 = vand.u32 %v45, 4294901760
    %321 = vmatpush.msra.mxu0 %v320
    %v322 = vand.u32 %v44, 4294901760
    %323 = vmatpush.msra.mxu0 %v322
    %v324 = vand.u32 %v43, 4294901760
    %325 = vmatpush.msra.mxu0 %v324
    %v326 = vand.u32 %v42, 4294901760
    %v327 = vsub.f32 %v42, %v326
    %v328 = vand.u32 %v327, 4294901760
    %329 = vmatmul.f32.gmra.mxu0 %v328
    %v330 = vpop.f32.mrf.mxu0
    %v331 = vadd.f32 %v292, %v330
    %332 = vdwg.mxu0
    %v333 = vand.u32 %v58, 4294901760
    %v334 = vsub.f32 %v58, %v333
    %v335 = vand.u32 %v334, 4294901760
    %336 = vmatpush.msra.mxu0 %v335
    %v337 = vand.u32 %v57, 4294901760
    %v338 = vsub.f32 %v57, %v337
    %v339 = vand.u32 %v338, 4294901760
    %340 = vmatpush.msra.mxu0 %v339
    %v341 = vand.u32 %v56, 4294901760
    %v342 = vsub.f32 %v56, %v341
    %v343 = vand.u32 %v342, 4294901760
    %344 = vmatpush.msra.mxu0 %v343
    %v345 = vand.u32 %v55, 4294901760
    %v346 = vsub.f32 %v55, %v345
    %v347 = vand.u32 %v346, 4294901760
    %348 = vmatpush.msra.mxu0 %v347
    %v349 = vand.u32 %v54, 4294901760
    %v350 = vsub.f32 %v54, %v349
    %v351 = vand.u32 %v350, 4294901760
    %352 = vmatpush.msra.mxu0 %v351
    %v353 = vand.u32 %v53, 4294901760
    %v354 = vsub.f32 %v53, %v353
    %v355 = vand.u32 %v354, 4294901760
    %356 = vmatpush.msra.mxu0 %v355
    %v357 = vand.u32 %v52, 4294901760
    %v358 = vsub.f32 %v52, %v357
    %v359 = vand.u32 %v358, 4294901760
    %360 = vmatpush.msra.mxu0 %v359
    %v361 = vand.u32 %v51, 4294901760
    %v362 = vsub.f32 %v51, %v361
    %v363 = vand.u32 %v362, 4294901760
    %364 = vmatpush.msra.mxu0 %v363
    %v365 = vand.u32 %v50, 4294901760
    %v366 = vsub.f32 %v50, %v365
    %v367 = vand.u32 %v366, 4294901760
    %368 = vmatpush.msra.mxu0 %v367
    %v369 = vand.u32 %v49, 4294901760
    %v370 = vsub.f32 %v49, %v369
    %v371 = vand.u32 %v370, 4294901760
    %372 = vmatpush.msra.mxu0 %v371
    %v373 = vand.u32 %v48, 4294901760
    %v374 = vsub.f32 %v48, %v373
    %v375 = vand.u32 %v374, 4294901760
    %376 = vmatpush.msra.mxu0 %v375
    %v377 = vand.u32 %v47, 4294901760
    %v378 = vsub.f32 %v47, %v377
    %v379 = vand.u32 %v378, 4294901760
    %380 = vmatpush.msra.mxu0 %v379
    %v381 = vand.u32 %v46, 4294901760
    %v382 = vsub.f32 %v46, %v381
    %v383 = vand.u32 %v382, 4294901760
    %384 = vmatpush.msra.mxu0 %v383
    %v385 = vand.u32 %v45, 4294901760
    %v386 = vsub.f32 %v45, %v385
    %v387 = vand.u32 %v386, 4294901760
    %388 = vmatpush.msra.mxu0 %v387
    %v389 = vand.u32 %v44, 4294901760
    %v390 = vsub.f32 %v44, %v389
    %v391 = vand.u32 %v390, 4294901760
    %392 = vmatpush.msra.mxu0 %v391
    %v393 = vand.u32 %v43, 4294901760
    %v394 = vsub.f32 %v43, %v393
    %v395 = vand.u32 %v394, 4294901760
    %396 = vmatpush.msra.mxu0 %v395
    %v397 = vand.u32 %v42, 4294901760
    %398 = vmatmul.f32.gmra.mxu0 %v397
    %v399 = vpop.f32.mrf.mxu0
    %v400 = vadd.f32 %v331, %v399
    %401 = vdwg.mxu0
    %v402 = vand.u32 %v58, 4294901760
    %403 = vmatpush.msra.mxu0 %v402
    %v404 = vand.u32 %v57, 4294901760
    %405 = vmatpush.msra.mxu0 %v404
    %v406 = vand.u32 %v56, 4294901760
    %407 = vmatpush.msra.mxu0 %v406
    %v408 = vand.u32 %v55, 4294901760
    %409 = vmatpush.msra.mxu0 %v408
    %v410 = vand.u32 %v54, 4294901760
    %411 = vmatpush.msra.mxu0 %v410
    %v412 = vand.u32 %v53, 4294901760
    %413 = vmatpush.msra.mxu0 %v412
    %v414 = vand.u32 %v52, 4294901760
    %415 = vmatpush.msra.mxu0 %v414
    %v416 = vand.u32 %v51, 4294901760
    %417 = vmatpush.msra.mxu0 %v416
    %v418 = vand.u32 %v50, 4294901760
    %419 = vmatpush.msra.mxu0 %v418
    %v420 = vand.u32 %v49, 4294901760
    %421 = vmatpush.msra.mxu0 %v420
    %v422 = vand.u32 %v48, 4294901760
    %423 = vmatpush.msra.mxu0 %v422
    %v424 = vand.u32 %v47, 4294901760
    %425 = vmatpush.msra.mxu0 %v424
    %v426 = vand.u32 %v46, 4294901760
    %427 = vmatpush.msra.mxu0 %v426
    %v428 = vand.u32 %v45, 4294901760
    %429 = vmatpush.msra.mxu0 %v428
    %v430 = vand.u32 %v44, 4294901760
    %431 = vmatpush.msra.mxu0 %v430
    %v432 = vand.u32 %v43, 4294901760
    %433 = vmatpush.msra.mxu0 %v432
    %v434 = vand.u32 %v42, 4294901760
    %435 = vmatmul.f32.gmra.mxu0 %v434
    %v436 = vpop.f32.mrf.mxu0
    %v437 = vadd.f32 %v400, %v436
    %438 = vdwg.mxu0
    %v439 = vmax.f32 %v437, 0.0
    %v440 = vperm.slane %v95, 0
    %v441 = vand.u32 %v75, 4294901760
    %442 = vmatpush.msra.mxu0 %v441
    %v443 = vand.u32 %v74, 4294901760
    %444 = vmatpush.msra.mxu0 %v443
    %v445 = vand.u32 %v73, 4294901760
    %446 = vmatpush.msra.mxu0 %v445
    %v447 = vand.u32 %v72, 4294901760
    %448 = vmatpush.msra.mxu0 %v447
    %v449 = vand.u32 %v71, 4294901760
    %450 = vmatpush.msra.mxu0 %v449
    %v451 = vand.u32 %v70, 4294901760
    %452 = vmatpush.msra.mxu0 %v451
    %v453 = vand.u32 %v69, 4294901760
    %454 = vmatpush.msra.mxu0 %v453
    %v455 = vand.u32 %v68, 4294901760
    %456 = vmatpush.msra.mxu0 %v455
    %v457 = vand.u32 %v67, 4294901760
    %458 = vmatpush.msra.mxu0 %v457
    %v459 = vand.u32 %v66, 4294901760
    %460 = vmatpush.msra.mxu0 %v459
    %v461 = vand.u32 %v65, 4294901760
    %462 = vmatpush.msra.mxu0 %v461
    %v463 = vand.u32 %v64, 4294901760
    %464 = vmatpush.msra.mxu0 %v463
    %v465 = vand.u32 %v63, 4294901760
    %466 = vmatpush.msra.mxu0 %v465
    %v467 = vand.u32 %v62, 4294901760
    %468 = vmatpush.msra.mxu0 %v467
    %v469 = vand.u32 %v61, 4294901760
    %470 = vmatpush.msra.mxu0 %v469
    %v471 = vand.u32 %v60, 4294901760
    %472 = vmatpush.msra.mxu0 %v471
    %v473 = vand.u32 %v439, 4294901760
    %v474 = vsub.f32 %v439, %v473
    %v475 = vand.u32 %v474, 4294901760
    %v476 = vsub.f32 %v474, %v475
    %v477 = vand.u32 %v476, 4294901760
    %478 = vmatmul.f32.gmra.mxu0 %v477
    %v479 = vpop.f32.mrf.mxu0
    %v480 = vadd.f32 %v440, %v479
    %481 = vdwg.mxu0
    %v482 = vand.u32 %v75, 4294901760
    %v483 = vsub.f32 %v75, %v482
    %v484 = vand.u32 %v483, 4294901760
    %v485 = vsub.f32 %v483, %v484
    %v486 = vand.u32 %v485, 4294901760
    %487 = vmatpush.msra.mxu0 %v486
    %v488 = vand.u32 %v74, 4294901760
    %v489 = vsub.f32 %v74, %v488
    %v490 = vand.u32 %v489, 4294901760
    %v491 = vsub.f32 %v489, %v490
    %v492 = vand.u32 %v491, 4294901760
    %493 = vmatpush.msra.mxu0 %v492
    %v494 = vand.u32 %v73, 4294901760
    %v495 = vsub.f32 %v73, %v494
    %v496 = vand.u32 %v495, 4294901760
    %v497 = vsub.f32 %v495, %v496
    %v498 = vand.u32 %v497, 4294901760
    %499 = vmatpush.msra.mxu0 %v498
    %v500 = vand.u32 %v72, 4294901760
    %v501 = vsub.f32 %v72, %v500
    %v502 = vand.u32 %v501, 4294901760
    %v503 = vsub.f32 %v501, %v502
    %v504 = vand.u32 %v503, 4294901760
    %505 = vmatpush.msra.mxu0 %v504
    %v506 = vand.u32 %v71, 4294901760
    %v507 = vsub.f32 %v71, %v506
    %v508 = vand.u32 %v507, 4294901760
    %v509 = vsub.f32 %v507, %v508
    %v510 = vand.u32 %v509, 4294901760
    %511 = vmatpush.msra.mxu0 %v510
    %v512 = vand.u32 %v70, 4294901760
    %v513 = vsub.f32 %v70, %v512
    %v514 = vand.u32 %v513, 4294901760
    %v515 = vsub.f32 %v513, %v514
    %v516 = vand.u32 %v515, 4294901760
    %517 = vmatpush.msra.mxu0 %v516
    %v518 = vand.u32 %v69, 4294901760
    %v519 = vsub.f32 %v69, %v518
    %v520 = vand.u32 %v519, 4294901760
    %v521 = vsub.f32 %v519, %v520
    %v522 = vand.u32 %v521, 4294901760
    %523 = vmatpush.msra.mxu0 %v522
    %v524 = vand.u32 %v68, 4294901760
    %v525 = vsub.f32 %v68, %v524
    %v526 = vand.u32 %v525, 4294901760
    %v527 = vsub.f32 %v525, %v526
    %v528 = vand.u32 %v527, 4294901760
    %529 = vmatpush.msra.mxu0 %v528
    %v530 = vand.u32 %v67, 4294901760
    %v531 = vsub.f32 %v67, %v530
    %v532 = vand.u32 %v531, 4294901760
    %v533 = vsub.f32 %v531, %v532
    %v534 = vand.u32 %v533, 4294901760
    %535 = vmatpush.msra.mxu0 %v534
    %v536 = vand.u32 %v66, 4294901760
    %v537 = vsub.f32 %v66, %v536
    %v538 = vand.u32 %v537, 4294901760
    %v539 = vsub.f32 %v537, %v538
    %v540 = vand.u32 %v539, 4294901760
    %541 = vmatpush.msra.mxu0 %v540
    %v542 = vand.u32 %v65, 4294901760
    %v543 = vsub.f32 %v65, %v542
    %v544 = vand.u32 %v543, 4294901760
    %v545 = vsub.f32 %v543, %v544
    %v546 = vand.u32 %v545, 4294901760
    %547 = vmatpush.msra.mxu0 %v546
    %v548 = vand.u32 %v64, 4294901760
    %v549 = vsub.f32 %v64, %v548
    %v550 = vand.u32 %v549, 4294901760
    %v551 = vsub.f32 %v549, %v550
    %v552 = vand.u32 %v551, 4294901760
    %553 = vmatpush.msra.mxu0 %v552
    %v554 = vand.u32 %v63, 4294901760
    %v555 = vsub.f32 %v63, %v554
    %v556 = vand.u32 %v555, 4294901760
    %v557 = vsub.f32 %v555, %v556
    %v558 = vand.u32 %v557, 4294901760
    %559 = vmatpush.msra.mxu0 %v558
    %v560 = vand.u32 %v62, 4294901760
    %v561 = vsub.f32 %v62, %v560
    %v562 = vand.u32 %v561, 4294901760
    %v563 = vsub.f32 %v561, %v562
    %v564 = vand.u32 %v563, 4294901760
    %565 = vmatpush.msra.mxu0 %v564
    %v566 = vand.u32 %v61, 4294901760
    %v567 = vsub.f32 %v61, %v566
    %v568 = vand.u32 %v567, 4294901760
    %v569 = vsub.f32 %v567, %v568
    %v570 = vand.u32 %v569, 4294901760
    %571 = vmatpush.msra.mxu0 %v570
    %v572 = vand.u32 %v60, 4294901760
    %v573 = vsub.f32 %v60, %v572
    %v574 = vand.u32 %v573, 4294901760
    %v575 = vsub.f32 %v573, %v574
    %v576 = vand.u32 %v575, 4294901760
    %577 = vmatpush.msra.mxu0 %v576
    %v578 = vand.u32 %v439, 4294901760
    %579 = vmatmul.f32.gmra.mxu0 %v578
    %v580 = vpop.f32.mrf.mxu0
    %v581 = vadd.f32 %v480, %v580
    %582 = vdwg.mxu0
    %v583 = vand.u32 %v75, 4294901760
    %v584 = vsub.f32 %v75, %v583
    %585 = vmatpush.msra.mxu0 %v584
    %v586 = vand.u32 %v74, 4294901760
    %v587 = vsub.f32 %v74, %v586
    %588 = vmatpush.msra.mxu0 %v587
    %v589 = vand.u32 %v73, 4294901760
    %v590 = vsub.f32 %v73, %v589
    %591 = vmatpush.msra.mxu0 %v590
    %v592 = vand.u32 %v72, 4294901760
    %v593 = vsub.f32 %v72, %v592
    %594 = vmatpush.msra.mxu0 %v593
    %v595 = vand.u32 %v71, 4294901760
    %v596 = vsub.f32 %v71, %v595
    %597 = vmatpush.msra.mxu0 %v596
    %v598 = vand.u32 %v70, 4294901760
    %v599 = vsub.f32 %v70, %v598
    %600 = vmatpush.msra.mxu0 %v599
    %v601 = vand.u32 %v69, 4294901760
    %v602 = vsub.f32 %v69, %v601
    %603 = vmatpush.msra.mxu0 %v602
    %v604 = vand.u32 %v68, 4294901760
    %v605 = vsub.f32 %v68, %v604
    %606 = vmatpush.msra.mxu0 %v605
    %v607 = vand.u32 %v67, 4294901760
    %v608 = vsub.f32 %v67, %v607
    %609 = vmatpush.msra.mxu0 %v608
    %v610 = vand.u32 %v66, 4294901760
    %v611 = vsub.f32 %v66, %v610
    %612 = vmatpush.msra.mxu0 %v611
    %v613 = vand.u32 %v65, 4294901760
    %v614 = vsub.f32 %v65, %v613
    %615 = vmatpush.msra.mxu0 %v614
    %v616 = vand.u32 %v64, 4294901760
    %v617 = vsub.f32 %v64, %v616
    %618 = vmatpush.msra.mxu0 %v617
    %v619 = vand.u32 %v63, 4294901760
    %v620 = vsub.f32 %v63, %v619
    %621 = vmatpush.msra.mxu0 %v620
    %v622 = vand.u32 %v62, 4294901760
    %v623 = vsub.f32 %v62, %v622
    %624 = vmatpush.msra.mxu0 %v623
    %v625 = vand.u32 %v61, 4294901760
    %v626 = vsub.f32 %v61, %v625
    %627 = vmatpush.msra.mxu0 %v626
    %v628 = vand.u32 %v60, 4294901760
    %v629 = vsub.f32 %v60, %v628
    %630 = vmatpush.msra.mxu0 %v629
    %v631 = vand.u32 %v439, 4294901760
    %v632 = vsub.f32 %v439, %v631
    %633 = vmatmul.f32.gmra.mxu0 %v632
    %v634 = vpop.f32.mrf.mxu0
    %v635 = vadd.f32 %v581, %v634
    %636 = vdwg.mxu0
    %v637 = vand.u32 %v75, 4294901760
    %638 = vmatpush.msra.mxu0 %v637
    %v639 = vand.u32 %v74, 4294901760
    %640 = vmatpush.msra.mxu0 %v639
    %v641 = vand.u32 %v73, 4294901760
    %642 = vmatpush.msra.mxu0 %v641
    %v643 = vand.u32 %v72, 4294901760
    %644 = vmatpush.msra.mxu0 %v643
    %v645 = vand.u32 %v71, 4294901760
    %646 = vmatpush.msra.mxu0 %v645
    %v647 = vand.u32 %v70, 4294901760
    %648 = vmatpush.msra.mxu0 %v647
    %v649 = vand.u32 %v69, 4294901760
    %650 = vmatpush.msra.mxu0 %v649
    %v651 = vand.u32 %v68, 4294901760
    %652 = vmatpush.msra.mxu0 %v651
    %v653 = vand.u32 %v67, 4294901760
    %654 = vmatpush.msra.mxu0 %v653
    %v655 = vand.u32 %v66, 4294901760
    %656 = vmatpush.msra.mxu0 %v655
    %v657 = vand.u32 %v65, 4294901760
    %658 = vmatpush.msra.mxu0 %v657
    %v659 = vand.u32 %v64, 4294901760
    %660 = vmatpush.msra.mxu0 %v659
    %v661 = vand.u32 %v63, 4294901760
    %662 = vmatpush.msra.mxu0 %v661
    %v663 = vand.u32 %v62, 4294901760
    %664 = vmatpush.msra.mxu0 %v663
    %v665 = vand.u32 %v61, 4294901760
    %666 = vmatpush.msra.mxu0 %v665
    %v667 = vand.u32 %v60, 4294901760
    %668 = vmatpush.msra.mxu0 %v667
    %v669 = vand.u32 %v439, 4294901760
    %v670 = vsub.f32 %v439, %v669
    %v671 = vand.u32 %v670, 4294901760
    %672 = vmatmul.f32.gmra.mxu0 %v671
    %v673 = vpop.f32.mrf.mxu0
    %v674 = vadd.f32 %v635, %v673
    %675 = vdwg.mxu0
    %v676 = vand.u32 %v75, 4294901760
    %v677 = vsub.f32 %v75, %v676
    %v678 = vand.u32 %v677, 4294901760
    %679 = vmatpush.msra.mxu0 %v678
    %v680 = vand.u32 %v74, 4294901760
    %v681 = vsub.f32 %v74, %v680
    %v682 = vand.u32 %v681, 4294901760
    %683 = vmatpush.msra.mxu0 %v682
    %v684 = vand.u32 %v73, 4294901760
    %v685 = vsub.f32 %v73, %v684
    %v686 = vand.u32 %v685, 4294901760
    %687 = vmatpush.msra.mxu0 %v686
    %v688 = vand.u32 %v72, 4294901760
    %v689 = vsub.f32 %v72, %v688
    %v690 = vand.u32 %v689, 4294901760
    %691 = vmatpush.msra.mxu0 %v690
    %v692 = vand.u32 %v71, 4294901760
    %v693 = vsub.f32 %v71, %v692
    %v694 = vand.u32 %v693, 4294901760
    %695 = vmatpush.msra.mxu0 %v694
    %v696 = vand.u32 %v70, 4294901760
    %v697 = vsub.f32 %v70, %v696
    %v698 = vand.u32 %v697, 4294901760
    %699 = vmatpush.msra.mxu0 %v698
    %v700 = vand.u32 %v69, 4294901760
    %v701 = vsub.f32 %v69, %v700
    %v702 = vand.u32 %v701, 4294901760
    %703 = vmatpush.msra.mxu0 %v702
    %v704 = vand.u32 %v68, 4294901760
    %v705 = vsub.f32 %v68, %v704
    %v706 = vand.u32 %v705, 4294901760
    %707 = vmatpush.msra.mxu0 %v706
    %v708 = vand.u32 %v67, 4294901760
    %v709 = vsub.f32 %v67, %v708
    %v710 = vand.u32 %v709, 4294901760
    %711 = vmatpush.msra.mxu0 %v710
    %v712 = vand.u32 %v66, 4294901760
    %v713 = vsub.f32 %v66, %v712
    %v714 = vand.u32 %v713, 4294901760
    %715 = vmatpush.msra.mxu0 %v714
    %v716 = vand.u32 %v65, 4294901760
    %v717 = vsub.f32 %v65, %v716
    %v718 = vand.u32 %v717, 4294901760
    %719 = vmatpush.msra.mxu0 %v718
    %v720 = vand.u32 %v64, 4294901760
    %v721 = vsub.f32 %v64, %v720
    %v722 = vand.u32 %v721, 4294901760
    %723 = vmatpush.msra.mxu0 %v722
    %v724 = vand.u32 %v63, 4294901760
    %v725 = vsub.f32 %v63, %v724
    %v726 = vand.u32 %v725, 4294901760
    %727 = vmatpush.msra.mxu0 %v726
    %v728 = vand.u32 %v62, 4294901760
    %v729 = vsub.f32 %v62, %v728
    %v730 = vand.u32 %v729, 4294901760
    %731 = vmatpush.msra.mxu0 %v730
    %v732 = vand.u32 %v61, 4294901760
    %v733 = vsub.f32 %v61, %v732
    %v734 = vand.u32 %v733, 4294901760
    %735 = vmatpush.msra.mxu0 %v734
    %v736 = vand.u32 %v60, 4294901760
    %v737 = vsub.f32 %v60, %v736
    %v738 = vand.u32 %v737, 4294901760
    %739 = vmatpush.msra.mxu0 %v738
    %v740 = vand.u32 %v439, 4294901760
    %741 = vmatmul.f32.gmra.mxu0 %v740
    %v742 = vpop.f32.mrf.mxu0
    %v743 = vadd.f32 %v674, %v742
    %744 = vdwg.mxu0
    %v745 = vand.u32 %v75, 4294901760
    %746 = vmatpush.msra.mxu0 %v745
    %v747 = vand.u32 %v74, 4294901760
    %748 = vmatpush.msra.mxu0 %v747
    %v749 = vand.u32 %v73, 4294901760
    %750 = vmatpush.msra.mxu0 %v749
    %v751 = vand.u32 %v72, 4294901760
    %752 = vmatpush.msra.mxu0 %v751
    %v753 = vand.u32 %v71, 4294901760
    %754 = vmatpush.msra.mxu0 %v753
    %v755 = vand.u32 %v70, 4294901760
    %756 = vmatpush.msra.mxu0 %v755
    %v757 = vand.u32 %v69, 4294901760
    %758 = vmatpush.msra.mxu0 %v757
    %v759 = vand.u32 %v68, 4294901760
    %760 = vmatpush.msra.mxu0 %v759
    %v761 = vand.u32 %v67, 4294901760
    %762 = vmatpush.msra.mxu0 %v761
    %v763 = vand.u32 %v66, 4294901760
    %764 = vmatpush.msra.mxu0 %v763
    %v765 = vand.u32 %v65, 4294901760
    %766 = vmatpush.msra.mxu0 %v765
    %v767 = vand.u32 %v64, 4294901760
    %768 = vmatpush.msra.mxu0 %v767
    %v769 = vand.u32 %v63, 4294901760
    %770 = vmatpush.msra.mxu0 %v769
    %v771 = vand.u32 %v62, 4294901760
    %772 = vmatpush.msra.mxu0 %v771
    %v773 = vand.u32 %v61, 4294901760
    %774 = vmatpush.msra.mxu0 %v773
    %v775 = vand.u32 %v60, 4294901760
    %776 = vmatpush.msra.mxu0 %v775
    %v777 = vand.u32 %v439, 4294901760
    %778 = vmatmul.f32.gmra.mxu0 %v777
    %v779 = vpop.f32.mrf.mxu0
    %v780 = vadd.f32 %v743, %v779
    %781 = vdwg.mxu0
    %v782 = vmax.f32 %v780, 0.0
    %v783 = vperm.slane %v96, 0
    %v784 = vand.u32 %v92, 4294901760
    %785 = vmatpush.msra.mxu0 %v784
    %v786 = vand.u32 %v91, 4294901760
    %787 = vmatpush.msra.mxu0 %v786
    %v788 = vand.u32 %v90, 4294901760
    %789 = vmatpush.msra.mxu0 %v788
    %v790 = vand.u32 %v89, 4294901760
    %791 = vmatpush.msra.mxu0 %v790
    %v792 = vand.u32 %v88, 4294901760
    %793 = vmatpush.msra.mxu0 %v792
    %v794 = vand.u32 %v87, 4294901760
    %795 = vmatpush.msra.mxu0 %v794
    %v796 = vand.u32 %v86, 4294901760
    %797 = vmatpush.msra.mxu0 %v796
    %v798 = vand.u32 %v85, 4294901760
    %799 = vmatpush.msra.mxu0 %v798
    %v800 = vand.u32 %v84, 4294901760
    %801 = vmatpush.msra.mxu0 %v800
    %v802 = vand.u32 %v83, 4294901760
    %803 = vmatpush.msra.mxu0 %v802
    %v804 = vand.u32 %v82, 4294901760
    %805 = vmatpush.msra.mxu0 %v804
    %v806 = vand.u32 %v81, 4294901760
    %807 = vmatpush.msra.mxu0 %v806
    %v808 = vand.u32 %v80, 4294901760
    %809 = vmatpush.msra.mxu0 %v808
    %v810 = vand.u32 %v79, 4294901760
    %811 = vmatpush.msra.mxu0 %v810
    %v812 = vand.u32 %v78, 4294901760
    %813 = vmatpush.msra.mxu0 %v812
    %v814 = vand.u32 %v77, 4294901760
    %815 = vmatpush.msra.mxu0 %v814
    %v816 = vand.u32 %v782, 4294901760
    %v817 = vsub.f32 %v782, %v816
    %v818 = vand.u32 %v817, 4294901760
    %v819 = vsub.f32 %v817, %v818
    %v820 = vand.u32 %v819, 4294901760
    %821 = vmatmul.f32.gmra.mxu0 %v820
    %v822 = vpop.f32.mrf.mxu0
    %v823 = vadd.f32 %v783, %v822
    %824 = vdwg.mxu0
    %v825 = vand.u32 %v92, 4294901760
    %v826 = vsub.f32 %v92, %v825
    %v827 = vand.u32 %v826, 4294901760
    %v828 = vsub.f32 %v826, %v827
    %v829 = vand.u32 %v828, 4294901760
    %830 = vmatpush.msra.mxu0 %v829
    %v831 = vand.u32 %v91, 4294901760
    %v832 = vsub.f32 %v91, %v831
    %v833 = vand.u32 %v832, 4294901760
    %v834 = vsub.f32 %v832, %v833
    %v835 = vand.u32 %v834, 4294901760
    %836 = vmatpush.msra.mxu0 %v835
    %v837 = vand.u32 %v90, 4294901760
    %v838 = vsub.f32 %v90, %v837
    %v839 = vand.u32 %v838, 4294901760
    %v840 = vsub.f32 %v838, %v839
    %v841 = vand.u32 %v840, 4294901760
    %842 = vmatpush.msra.mxu0 %v841
    %v843 = vand.u32 %v89, 4294901760
    %v844 = vsub.f32 %v89, %v843
    %v845 = vand.u32 %v844, 4294901760
    %v846 = vsub.f32 %v844, %v845
    %v847 = vand.u32 %v846, 4294901760
    %848 = vmatpush.msra.mxu0 %v847
    %v849 = vand.u32 %v88, 4294901760
    %v850 = vsub.f32 %v88, %v849
    %v851 = vand.u32 %v850, 4294901760
    %v852 = vsub.f32 %v850, %v851
    %v853 = vand.u32 %v852, 4294901760
    %854 = vmatpush.msra.mxu0 %v853
    %v855 = vand.u32 %v87, 4294901760
    %v856 = vsub.f32 %v87, %v855
    %v857 = vand.u32 %v856, 4294901760
    %v858 = vsub.f32 %v856, %v857
    %v859 = vand.u32 %v858, 4294901760
    %860 = vmatpush.msra.mxu0 %v859
    %v861 = vand.u32 %v86, 4294901760
    %v862 = vsub.f32 %v86, %v861
    %v863 = vand.u32 %v862, 4294901760
    %v864 = vsub.f32 %v862, %v863
    %v865 = vand.u32 %v864, 4294901760
    %866 = vmatpush.msra.mxu0 %v865
    %v867 = vand.u32 %v85, 4294901760
    %v868 = vsub.f32 %v85, %v867
    %v869 = vand.u32 %v868, 4294901760
    %v870 = vsub.f32 %v868, %v869
    %v871 = vand.u32 %v870, 4294901760
    %872 = vmatpush.msra.mxu0 %v871
    %v873 = vand.u32 %v84, 4294901760
    %v874 = vsub.f32 %v84, %v873
    %v875 = vand.u32 %v874, 4294901760
    %v876 = vsub.f32 %v874, %v875
    %v877 = vand.u32 %v876, 4294901760
    %878 = vmatpush.msra.mxu0 %v877
    %v879 = vand.u32 %v83, 4294901760
    %v880 = vsub.f32 %v83, %v879
    %v881 = vand.u32 %v880, 4294901760
    %v882 = vsub.f32 %v880, %v881
    %v883 = vand.u32 %v882, 4294901760
    %884 = vmatpush.msra.mxu0 %v883
    %v885 = vand.u32 %v82, 4294901760
    %v886 = vsub.f32 %v82, %v885
    %v887 = vand.u32 %v886, 4294901760
    %v888 = vsub.f32 %v886, %v887
    %v889 = vand.u32 %v888, 4294901760
    %890 = vmatpush.msra.mxu0 %v889
    %v891 = vand.u32 %v81, 4294901760
    %v892 = vsub.f32 %v81, %v891
    %v893 = vand.u32 %v892, 4294901760
    %v894 = vsub.f32 %v892, %v893
    %v895 = vand.u32 %v894, 4294901760
    %896 = vmatpush.msra.mxu0 %v895
    %v897 = vand.u32 %v80, 4294901760
    %v898 = vsub.f32 %v80, %v897
    %v899 = vand.u32 %v898, 4294901760
    %v900 = vsub.f32 %v898, %v899
    %v901 = vand.u32 %v900, 4294901760
    %902 = vmatpush.msra.mxu0 %v901
    %v903 = vand.u32 %v79, 4294901760
    %v904 = vsub.f32 %v79, %v903
    %v905 = vand.u32 %v904, 4294901760
    %v906 = vsub.f32 %v904, %v905
    %v907 = vand.u32 %v906, 4294901760
    %908 = vmatpush.msra.mxu0 %v907
    %v909 = vand.u32 %v78, 4294901760
    %v910 = vsub.f32 %v78, %v909
    %v911 = vand.u32 %v910, 4294901760
    %v912 = vsub.f32 %v910, %v911
    %v913 = vand.u32 %v912, 4294901760
    %914 = vmatpush.msra.mxu0 %v913
    %v915 = vand.u32 %v77, 4294901760
    %v916 = vsub.f32 %v77, %v915
    %v917 = vand.u32 %v916, 4294901760
    %v918 = vsub.f32 %v916, %v917
    %v919 = vand.u32 %v918, 4294901760
    %920 = vmatpush.msra.mxu0 %v919
    %v921 = vand.u32 %v782, 4294901760
    %922 = vmatmul.f32.gmra.mxu0 %v921
    %v923 = vpop.f32.mrf.mxu0
    %v924 = vadd.f32 %v823, %v923
    %925 = vdwg.mxu0
    %v926 = vand.u32 %v92, 4294901760
    %v927 = vsub.f32 %v92, %v926
    %928 = vmatpush.msra.mxu0 %v927
    %v929 = vand.u32 %v91, 4294901760
    %v930 = vsub.f32 %v91, %v929
    %931 = vmatpush.msra.mxu0 %v930
    %v932 = vand.u32 %v90, 4294901760
    %v933 = vsub.f32 %v90, %v932
    %934 = vmatpush.msra.mxu0 %v933
    %v935 = vand.u32 %v89, 4294901760
    %v936 = vsub.f32 %v89, %v935
    %937 = vmatpush.msra.mxu0 %v936
    %v938 = vand.u32 %v88, 4294901760
    %v939 = vsub.f32 %v88, %v938
    %940 = vmatpush.msra.mxu0 %v939
    %v941 = vand.u32 %v87, 4294901760
    %v942 = vsub.f32 %v87, %v941
    %943 = vmatpush.msra.mxu0 %v942
    %v944 = vand.u32 %v86, 4294901760
    %v945 = vsub.f32 %v86, %v944
    %946 = vmatpush.msra.mxu0 %v945
    %v947 = vand.u32 %v85, 4294901760
    %v948 = vsub.f32 %v85, %v947
    %949 = vmatpush.msra.mxu0 %v948
    %v950 = vand.u32 %v84, 4294901760
    %v951 = vsub.f32 %v84, %v950
    %952 = vmatpush.msra.mxu0 %v951
    %v953 = vand.u32 %v83, 4294901760
    %v954 = vsub.f32 %v83, %v953
    %955 = vmatpush.msra.mxu0 %v954
    %v956 = vand.u32 %v82, 4294901760
    %v957 = vsub.f32 %v82, %v956
    %958 = vmatpush.msra.mxu0 %v957
    %v959 = vand.u32 %v81, 4294901760
    %v960 = vsub.f32 %v81, %v959
    %961 = vmatpush.msra.mxu0 %v960
    %v962 = vand.u32 %v80, 4294901760
    %v963 = vsub.f32 %v80, %v962
    %964 = vmatpush.msra.mxu0 %v963
    %v965 = vand.u32 %v79, 4294901760
    %v966 = vsub.f32 %v79, %v965
    %967 = vmatpush.msra.mxu0 %v966
    %v968 = vand.u32 %v78, 4294901760
    %v969 = vsub.f32 %v78, %v968
    %970 = vmatpush.msra.mxu0 %v969
    %v971 = vand.u32 %v77, 4294901760
    %v972 = vsub.f32 %v77, %v971
    %973 = vmatpush.msra.mxu0 %v972
    %v974 = vand.u32 %v782, 4294901760
    %v975 = vsub.f32 %v782, %v974
    %976 = vmatmul.f32.gmra.mxu0 %v975
    %v977 = vpop.f32.mrf.mxu0
    %v978 = vadd.f32 %v924, %v977
    %979 = vdwg.mxu0
    %v980 = vand.u32 %v92, 4294901760
    %981 = vmatpush.msra.mxu0 %v980
    %v982 = vand.u32 %v91, 4294901760
    %983 = vmatpush.msra.mxu0 %v982
    %v984 = vand.u32 %v90, 4294901760
    %985 = vmatpush.msra.mxu0 %v984
    %v986 = vand.u32 %v89, 4294901760
    %987 = vmatpush.msra.mxu0 %v986
    %v988 = vand.u32 %v88, 4294901760
    %989 = vmatpush.msra.mxu0 %v988
    %v990 = vand.u32 %v87, 4294901760
    %991 = vmatpush.msra.mxu0 %v990
    %v992 = vand.u32 %v86, 4294901760
    %993 = vmatpush.msra.mxu0 %v992
    %v994 = vand.u32 %v85, 4294901760
    %995 = vmatpush.msra.mxu0 %v994
    %v996 = vand.u32 %v84, 4294901760
    %997 = vmatpush.msra.mxu0 %v996
    %v998 = vand.u32 %v83, 4294901760
    %999 = vmatpush.msra.mxu0 %v998
    %v1000 = vand.u32 %v82, 4294901760
    %1001 = vmatpush.msra.mxu0 %v1000
    %v1002 = vand.u32 %v81, 4294901760
    %1003 = vmatpush.msra.mxu0 %v1002
    %v1004 = vand.u32 %v80, 4294901760
    %1005 = vmatpush.msra.mxu0 %v1004
    %v1006 = vand.u32 %v79, 4294901760
    %1007 = vmatpush.msra.mxu0 %v1006
    %v1008 = vand.u32 %v78, 4294901760
    %1009 = vmatpush.msra.mxu0 %v1008
    %v1010 = vand.u32 %v77, 4294901760
    %1011 = vmatpush.msra.mxu0 %v1010
    %v1012 = vand.u32 %v782, 4294901760
    %v1013 = vsub.f32 %v782, %v1012
    %v1014 = vand.u32 %v1013, 4294901760
    %1015 = vmatmul.f32.gmra.mxu0 %v1014
    %v1016 = vpop.f32.mrf.mxu0
    %v1017 = vadd.f32 %v978, %v1016
    %1018 = vdwg.mxu0
    %v1019 = vand.u32 %v92, 4294901760
    %v1020 = vsub.f32 %v92, %v1019
    %v1021 = vand.u32 %v1020, 4294901760
    %1022 = vmatpush.msra.mxu0 %v1021
    %v1023 = vand.u32 %v91, 4294901760
    %v1024 = vsub.f32 %v91, %v1023
    %v1025 = vand.u32 %v1024, 4294901760
    %1026 = vmatpush.msra.mxu0 %v1025
    %v1027 = vand.u32 %v90, 4294901760
    %v1028 = vsub.f32 %v90, %v1027
    %v1029 = vand.u32 %v1028, 4294901760
    %1030 = vmatpush.msra.mxu0 %v1029
    %v1031 = vand.u32 %v89, 4294901760
    %v1032 = vsub.f32 %v89, %v1031
    %v1033 = vand.u32 %v1032, 4294901760
    %1034 = vmatpush.msra.mxu0 %v1033
    %v1035 = vand.u32 %v88, 4294901760
    %v1036 = vsub.f32 %v88, %v1035
    %v1037 = vand.u32 %v1036, 4294901760
    %1038 = vmatpush.msra.mxu0 %v1037
    %v1039 = vand.u32 %v87, 4294901760
    %v1040 = vsub.f32 %v87, %v1039
    %v1041 = vand.u32 %v1040, 4294901760
    %1042 = vmatpush.msra.mxu0 %v1041
    %v1043 = vand.u32 %v86, 4294901760
    %v1044 = vsub.f32 %v86, %v1043
    %v1045 = vand.u32 %v1044, 4294901760
    %1046 = vmatpush.msra.mxu0 %v1045
    %v1047 = vand.u32 %v85, 4294901760
    %v1048 = vsub.f32 %v85, %v1047
    %v1049 = vand.u32 %v1048, 4294901760
    %1050 = vmatpush.msra.mxu0 %v1049
    %v1051 = vand.u32 %v84, 4294901760
    %v1052 = vsub.f32 %v84, %v1051
    %v1053 = vand.u32 %v1052, 4294901760
    %1054 = vmatpush.msra.mxu0 %v1053
    %v1055 = vand.u32 %v83, 4294901760
    %v1056 = vsub.f32 %v83, %v1055
    %v1057 = vand.u32 %v1056, 4294901760
    %1058 = vmatpush.msra.mxu0 %v1057
    %v1059 = vand.u32 %v82, 4294901760
    %v1060 = vsub.f32 %v82, %v1059
    %v1061 = vand.u32 %v1060, 4294901760
    %1062 = vmatpush.msra.mxu0 %v1061
    %v1063 = vand.u32 %v81, 4294901760
    %v1064 = vsub.f32 %v81, %v1063
    %v1065 = vand.u32 %v1064, 4294901760
    %1066 = vmatpush.msra.mxu0 %v1065
    %v1067 = vand.u32 %v80, 4294901760
    %v1068 = vsub.f32 %v80, %v1067
    %v1069 = vand.u32 %v1068, 4294901760
    %1070 = vmatpush.msra.mxu0 %v1069
    %v1071 = vand.u32 %v79, 4294901760
    %v1072 = vsub.f32 %v79, %v1071
    %v1073 = vand.u32 %v1072, 4294901760
    %1074 = vmatpush.msra.mxu0 %v1073
    %v1075 = vand.u32 %v78, 4294901760
    %v1076 = vsub.f32 %v78, %v1075
    %v1077 = vand.u32 %v1076, 4294901760
    %1078 = vmatpush.msra.mxu0 %v1077
    %v1079 = vand.u32 %v77, 4294901760
    %v1080 = vsub.f32 %v77, %v1079
    %v1081 = vand.u32 %v1080, 4294901760
    %1082 = vmatpush.msra.mxu0 %v1081
    %v1083 = vand.u32 %v782, 4294901760
    %1084 = vmatmul.f32.gmra.mxu0 %v1083
    %v1085 = vpop.f32.mrf.mxu0
    %v1086 = vadd.f32 %v1017, %v1085
    %1087 = vdwg.mxu0
    %v1088 = vand.u32 %v92, 4294901760
    %1089 = vmatpush.msra.mxu0 %v1088
    %v1090 = vand.u32 %v91, 4294901760
    %1091 = vmatpush.msra.mxu0 %v1090
    %v1092 = vand.u32 %v90, 4294901760
    %1093 = vmatpush.msra.mxu0 %v1092
    %v1094 = vand.u32 %v89, 4294901760
    %1095 = vmatpush.msra.mxu0 %v1094
    %v1096 = vand.u32 %v88, 4294901760
    %1097 = vmatpush.msra.mxu0 %v1096
    %v1098 = vand.u32 %v87, 4294901760
    %1099 = vmatpush.msra.mxu0 %v1098
    %v1100 = vand.u32 %v86, 4294901760
    %1101 = vmatpush.msra.mxu0 %v1100
    %v1102 = vand.u32 %v85, 4294901760
    %1103 = vmatpush.msra.mxu0 %v1102
    %v1104 = vand.u32 %v84, 4294901760
    %1105 = vmatpush.msra.mxu0 %v1104
    %v1106 = vand.u32 %v83, 4294901760
    %1107 = vmatpush.msra.mxu0 %v1106
    %v1108 = vand.u32 %v82, 4294901760
    %1109 = vmatpush.msra.mxu0 %v1108
    %v1110 = vand.u32 %v81, 4294901760
    %1111 = vmatpush.msra.mxu0 %v1110
    %v1112 = vand.u32 %v80, 4294901760
    %1113 = vmatpush.msra.mxu0 %v1112
    %v1114 = vand.u32 %v79, 4294901760
    %1115 = vmatpush.msra.mxu0 %v1114
    %v1116 = vand.u32 %v78, 4294901760
    %1117 = vmatpush.msra.mxu0 %v1116
    %v1118 = vand.u32 %v77, 4294901760
    %1119 = vmatpush.msra.mxu0 %v1118
    %v1120 = vand.u32 %v782, 4294901760
    %1121 = vmatmul.f32.gmra.mxu0 %v1120
    %v1122 = vpop.f32.mrf.mxu0
    %v1123 = vadd.f32 %v1086, %v1122
    %1124 = vdwg.mxu0
    %v1125 = vxor.u32 %v1123, 2147483648
    %v1126 = vmul.f32 %v1125, 1.442695
    %v1127 = vpow.pop %v1126
    %v1128 = vadd.f32 %v1127, 1.0
    %v1129 = vrcp.pop %v1128
    %v1130 = vmul.f32 %v1128, %v1129
    %v1131 = vsub.f32 1.0, %v1130
    %v1132 = vmul.f32 %v1129, %v1131
    %v1133 = vadd.f32 %v1129, %v1132
    %vm1134 = vweird.f32 %v1128
    %vm1135 = vweird.f32 %v1129
    %vm1136 = vmor %vm1134, %vm1135
    %v1137 = vsel %vm1136, %v1129, %v1133
    %v1138 = vand.u32 2147483647, %v1128
    %vm1139 = vcmp.eq.f32.partialorder %v1138, 8.507059e+37
    %v1140 = vand.u32 %v1128, 2147483648
    %v1141 = vor.u32 1.1754944e-38, %v1140
    %v1142 = vsel %vm1139, %v1141, %v1137
    %v1143 = vmul.f32 1.0, %v1142
    %1144 = vst [vmem:[#allocation7] sm:$0xff] %v1143
    // Predicated region
    $region18: #{tpu_custom_call.1} parent=1 // pred_check
      _
    $region19: #{tpu_custom_call.1} parent=1 // pred_check_branch
      %1146 = sbr.rel (0) target = $region21
    $region20: #{tpu_custom_call.1} parent=1 // pred_region
      %1148 = vsyncadd [#allocation4], 0
      %s1150 = sshll.u32 [#allocation7], 4
      %s1151 = int_to_ptr.vmem [resolvable:$true] %s1150
      %s1152 = sshll.u32 %s2, 4
      %s1153 = int_to_ptr.hbm [resolvable:$true] %s1152
      %1155 = dma.vmem_to_hbm [thread:$0]  %s1151, 128, %s1153, [#allocation4]
    $region21: #{tpu_custom_call.1} parent=1 // pred_fallthru
      _
    // Predicated region
    $region22: #{tpu_custom_call.1} parent=1 // pred_check
      _
    $region23: #{tpu_custom_call.1} parent=1 // pred_check_branch
      %1157 = sbr.rel (0) target = $region25
    $region24: #{tpu_custom_call.1} parent=1 // pred_region
      %1159 = dma.done [#allocation4], 128
    $region25: #{tpu_custom_call.1} parent=1 // pred_fallthru
      _
    %1160 = vsyncpa [#allocation3], 1
    %1161 = vsyncpa [#allocation6], 1
    %1162 = vsyncpa [#allocation4], 1

</llo_original>
